<compile_context>
chip_gen: v7x
topology: tpu7x:2x2x1
jax: 0.10.0
libtpu: 0.0.40
codegen_flags: <defaults>
</compile_context>

<pallas_src>
import jax
import jax.numpy as jnp
from jax.experimental import pallas as pl
from jax.experimental.pallas import tpu as pltpu


def _frozen_bn_kernel(x_ref, sb_ref, o_ref):
    # sb_ref is (TR, 2) float32: lane 0 = scale, lane 1 = bias, per (n, c) row.
    sb = sb_ref[...]
    scale = sb[:, 0:1]
    shift = sb[:, 1:2]
    o_ref[...] = (x_ref[...].astype(jnp.float32) * scale + shift).astype(o_ref.dtype)


def _tpu_generation_config():
    """Returns (target_block_bytes, vmem_limit_bytes, two_tensorcores)."""
    vmem_phys = None
    try:
        vmem_phys = int(pltpu.get_tpu_info().vmem_capacity_bytes)
    except Exception:
        pass
    if vmem_phys is None:
        # Unknown generation: conservative, safe under every default scoped limit.
        return 2 * 1024 * 1024, None, False
    if vmem_phys <= 96 * 1024 * 1024:
        # v7x: 64 MiB physical per TC, 2 TCs.  4 MiB blocks -> ~16 MiB
        # double-buffered in+out, within the 32 MiB scoped limit.
        return 4 * 1024 * 1024, 32 * 1024 * 1024, True
    # v5e / v6e: 128 MiB physical, 1 TC.  Raise the scoped limit explicitly
    # (v5e's default is only 16 MiB) so 4 MiB blocks pipeline cleanly.
    return 4 * 1024 * 1024, 48 * 1024 * 1024, False


def frozen_batchnorm2d(x, weight, bias, running_mean, running_var,
                       *, target_block_bytes=None):
    """Frozen BatchNorm2d forward: x * (w * rsqrt(rv + eps)) + (b - rm * scale).

    x: (N, C, H, W) float array (NCHW, same as the PyTorch module).
    weight/bias/running_mean/running_var: (C,).
    """
    N, C, H, W = x.shape
    rows, cols = N * C, H * W

    # ---- fold the 4 per-channel params into one packed (scale, bias) --------
    eps = jnp.float32(1e-5)
    w = weight.astype(jnp.float32)
    b = bias.astype(jnp.float32)
    rm = running_mean.astype(jnp.float32)
    rv = running_var.astype(jnp.float32)
    scale_c = w * jax.lax.rsqrt(rv + eps)                  # (C,)
    shift_c = b - rm * scale_c                             # (C,)
    sb = jnp.tile(jnp.stack([scale_c, shift_c], axis=-1)[None], (N, 1, 1))
    sb = sb.reshape(rows, 2)                               # (N*C, 2) float32

    x2 = x.reshape(rows, cols)                             # free view, no copy

    # ---- tiling: full-extent columns, pack-aligned row tiles ----------------
    elt_bytes = jnp.dtype(x.dtype).itemsize
    pack = max(8, 32 // max(elt_bytes, 1))                 # 8 f32 / 16 bf16 / 32 int8
    gen_block, vmem_limit, two_cores = _tpu_generation_config()
    target_block = target_block_bytes if target_block_bytes is not None else gen_block

    bytes_per_row = max(cols * elt_bytes, 1)
    TR = max(1, target_block // bytes_per_row)
    if TR >= rows:
        TR = rows                                          # one full-extent row block
        if two_cores and rows >= 2 * pack:
            # v7x: split so both TensorCores get a stream even for small inputs.
            half = -(-rows // 2)
            TR = -(-half // pack) * pack
            if TR >= rows:
                TR = rows
    else:
        TR = max(pack, (TR // pack) * pack)                # dtype-aware sublane pack
        if TR >= rows:
            TR = rows

    grid = (pl.cdiv(rows, TR),)                            # partial last block is masked

    x_spec = pl.BlockSpec((TR, cols), lambda i: (i, 0))    # cols == full extent (exempt)
    sb_spec = pl.BlockSpec((TR, 2), lambda i: (i, 0))      # one tiny param DMA / step
    o_spec = pl.BlockSpec((TR, cols), lambda i: (i, 0))

    cost = pl.CostEstimate(
        flops=2 * rows * cols,
        transcendentals=0,
        bytes_accessed=2 * rows * cols * elt_bytes + rows * 2 * 4,
    )

    out2 = pl.pallas_call(
        _frozen_bn_kernel,
        out_shape=jax.ShapeDtypeStruct((rows, cols), x.dtype),
        grid=grid,
        in_specs=[x_spec, sb_spec],
        out_specs=o_spec,
        compiler_params=pltpu.CompilerParams(
            dimension_semantics=("parallel",),
            vmem_limit_bytes=vmem_limit,
        ),
        cost_estimate=cost,
    )(x2, sb)

    return out2.reshape(N, C, H, W)


def frozen_batchnorm2d_ref(x, weight, bias, running_mean, running_var):
    # Pure-JAX reference mirroring the PyTorch forward exactly.
    w = weight.reshape(1, -1, 1, 1)
    b = bias.reshape(1, -1, 1, 1)
    rv = running_var.reshape(1, -1, 1, 1)
    rm = running_mean.reshape(1, -1, 1, 1)
    eps = 1e-5
    scale = w * jax.lax.rsqrt(rv + eps)
    bias_ = b - rm * scale
    return x * scale + bias_


if __name__ == "__main__":
    key = jax.random.PRNGKey(0)
    k_x, k_w, k_b, k_m, k_v, k_x2, k_x3 = jax.random.split(key, 7)

    N, C, H, W = 2, 4, 16, 16
    x = jax.random.normal(k_x, (N, C, H, W), dtype=jnp.float32)

    # Module __init__ uses ones/zeros; perturb deterministically so the affine
    # transform is non-trivial (no checkpoint loading needed).
    weight = jnp.ones((C,), jnp.float32) + 0.1 * jax.random.normal(k_w, (C,), jnp.float32)
    bias = jnp.zeros((C,), jnp.float32) + 0.1 * jax.random.normal(k_b, (C,), jnp.float32)
    running_mean = 0.1 * jax.random.normal(k_m, (C,), jnp.float32)
    running_var = jnp.ones((C,), jnp.float32) + 0.1 * jnp.abs(
        jax.random.normal(k_v, (C,), jnp.float32)
    )

    out = jax.block_until_ready(
        frozen_batchnorm2d(x, weight, bias, running_mean, running_var))
    ref = frozen_batchnorm2d_ref(x, weight, bias, running_mean, running_var)
    assert out.shape == (N, C, H, W)
    assert jnp.allclose(out, ref, atol=1e-5, rtol=1e-5), "mismatch (aligned shape)"

    # Unaligned H*W (63 lanes) and rows (6): single full-extent block, masked tails.
    xb = jax.random.normal(k_x2, (2, 3, 7, 9), dtype=jnp.float32)
    wb, bb, rmb, rvb = weight[:3], bias[:3], running_mean[:3], running_var[:3]
    outb = jax.block_until_ready(frozen_batchnorm2d(xb, wb, bb, rmb, rvb))
    refb = frozen_batchnorm2d_ref(xb, wb, bb, rmb, rvb)
    assert jnp.allclose(outb, refb, atol=1e-5, rtol=1e-5), "mismatch (unaligned shape)"

    # Multi-step grid with a masked partial last row-block AND a lane tail
    # (rows = 42 not a multiple of TR = 8, cols = 143 not a multiple of 128);
    # target_block_bytes forces the small-block path at test-friendly sizes.
    Cc = 21
    xc = jax.random.normal(k_x3, (2, Cc, 11, 13), dtype=jnp.float32)
    wc = jnp.ones((Cc,), jnp.float32) + 0.05 * jax.random.normal(k_w, (Cc,), jnp.float32)
    bc = 0.05 * jax.random.normal(k_b, (Cc,), jnp.float32)
    rmc = 0.05 * jax.random.normal(k_m, (Cc,), jnp.float32)
    rvc = jnp.ones((Cc,), jnp.float32) + 0.05 * jnp.abs(
        jax.random.normal(k_v, (Cc,), jnp.float32))
    outc = jax.block_until_ready(
        frozen_batchnorm2d(xc, wc, bc, rmc, rvc, target_block_bytes=4096))
    refc = frozen_batchnorm2d_ref(xc, wc, bc, rmc, rvc)
    assert jnp.allclose(outc, refc, atol=1e-5, rtol=1e-5), "mismatch (partial blocks)"

    print("KERNEL_OK")
</pallas_src>

<mosaic_0001>
module attributes {stable_mosaic.version = 11 : i64} {
  func.func @_frozen_bn_kernel(%arg0: i32, %arg1: memref<8x256xf32, #tpu.memory_space<vmem>>, %arg2: memref<8x2xf32, #tpu.memory_space<vmem>>, %arg3: memref<8x256xf32, #tpu.memory_space<vmem>>) attributes {dimension_semantics = [#tpu.dimension_semantics<parallel>], iteration_bounds = array<i64: 1>, scalar_prefetch = 0 : i64, scratch_operands = 0 : i64, tpu.core_type = #tpu.core_type<tc>, window_params = [{transform_indices = @transform_0, window_bounds = array<i64: 8, 256>}, {transform_indices = @transform_1, window_bounds = array<i64: 8, 2>}, {transform_indices = @transform_2, window_bounds = array<i64: 8, 256>}]} {
    %c0 = arith.constant 0 : index
    %c0_0 = arith.constant 0 : index
    %0 = vector.load %arg2[%c0, %c0_0] : memref<8x2xf32, #tpu.memory_space<vmem>>, vector<8x2xf32>
    %1 = vector.extract_strided_slice %0 {offsets = [0, 0], sizes = [8, 1], strides = [1, 1]} : vector<8x2xf32> to vector<8x1xf32>
    %2 = vector.extract_strided_slice %0 {offsets = [0, 1], sizes = [8, 1], strides = [1, 1]} : vector<8x2xf32> to vector<8x1xf32>
    %c0_1 = arith.constant 0 : index
    %c0_2 = arith.constant 0 : index
    %3 = vector.load %arg1[%c0_1, %c0_2] : memref<8x256xf32, #tpu.memory_space<vmem>>, vector<8x256xf32>
    %4 = vector.broadcast %1 : vector<8x1xf32> to vector<8x256xf32>
    %5 = arith.mulf %3, %4 : vector<8x256xf32>
    %6 = vector.broadcast %2 : vector<8x1xf32> to vector<8x256xf32>
    %7 = arith.addf %5, %6 : vector<8x256xf32>
    %c0_3 = arith.constant 0 : index
    %c0_4 = arith.constant 0 : index
    %8 = vector.load %arg3[%c0_3, %c0_4] : memref<8x256xf32, #tpu.memory_space<vmem>>, vector<8x256xf32>
    tpu.vector_store %arg3[%c0_3, %c0_4], %7 {strides = array<i32>} : memref<8x256xf32, #tpu.memory_space<vmem>>, vector<8x256xf32>,
    return
  }
  func.func @transform_0(%arg0: i32) -> (i32, i32) {
    %c0_i32 = arith.constant 0 : i32
    %c0_i32_0 = arith.constant 0 : i32
    return %arg0, %c0_i32 : i32, i32
  }
  func.func @transform_1(%arg0: i32) -> (i32, i32) {
    %c0_i32 = arith.constant 0 : i32
    %c0_i32_0 = arith.constant 0 : i32
    return %arg0, %c0_i32 : i32, i32
  }
  func.func @transform_2(%arg0: i32) -> (i32, i32) {
    %c0_i32 = arith.constant 0 : i32
    %c0_i32_0 = arith.constant 0 : i32
    return %arg0, %c0_i32 : i32, i32
  }
}

</mosaic_0001>

<llo_original>
// kernel: tpu_custom_call.1
$region0: #{tpu_custom_call.1}
  #allocation0 [shape = 'u32[]', space=smem, size = 0x4, offset = 0x4, fixed_abs, tag = 'smem constant byte address 0x4 - core index']
  #allocation1 [shape = 'u32[144,128]{1,0:T(1,128)}', space=vmem, size = 0x12000, scoped, tag = 'internal scratch']
  %s0 = inlined_call_operand.hbm [shape: f32[8,256], index: 0, kind: input, shape index: {}]
  %s1 = inlined_call_operand.vmem [shape: f32[8,2], index: 1, kind: input, shape index: {}]
  %s2 = inlined_call_operand.hbm [shape: f32[8,256], index: 2, kind: output, shape index: {}]
  %s3 = sld [smem:[#allocation0]]
  $region22: #{tpu_custom_call.1} parent=0
    _
  %s5 = ssub.s32 1, %s3
  %s6 = scalar_select 0, %s5, %s3
  $region1: #{tpu_custom_call.1} parent=0
    #allocation2 [shape = 'u8[8192]{0}', space=vmem, size = 0x2000, scoped, tag = 'input window, operand 0, single buffered']
    #allocation3 [shape = 's32[1]{0}', space=sflag, size = 0x4, scoped, tag = 'scoped memory for tpu_custom_call.1']
    #allocation4 [shape = 's32[1]{0}', space=sflag, size = 0x4, scoped, tag = 'scoped memory for tpu_custom_call.1']
    #allocation5 [shape = 'u8[8192]{0}', space=vmem, size = 0x2000, scoped, tag = 'output window, operand 0, single buffered']
    %7 = vsyncpa [#allocation3], 0
    %8 = vsyncpa [#allocation4], 0
    // Predicated region
    $region2: #{tpu_custom_call.1} parent=1 // pred_check
      _
    $region3: #{tpu_custom_call.1} parent=1 // pred_check_branch
      %10 = sbr.rel (0) target = $region5
    $region4: #{tpu_custom_call.1} parent=1 // pred_region
      %s12 = ssub.s32 256, 256
      %13 = vsyncadd [#allocation3], %s12
      %s15 = sshll.u32 [#allocation2], 4
      %s16 = int_to_ptr.vmem [resolvable:$true] %s15
      %18 = dma.hbm_to_vmem [thread:$0]  %s0, 256, %s16, [#allocation3]
    $region5: #{tpu_custom_call.1} parent=1 // pred_fallthru
      _
    // Predicated region
    $region6: #{tpu_custom_call.1} parent=1 // pred_check
      _
    $region7: #{tpu_custom_call.1} parent=1 // pred_check_branch
      %20 = sbr.rel (0) target = $region9
    $region8: #{tpu_custom_call.1} parent=1 // pred_region
      _
    $region9: #{tpu_custom_call.1} parent=1 // pred_fallthru
      _
    // Predicated region
    $region10: #{tpu_custom_call.1} parent=1 // pred_check
      _
    $region11: #{tpu_custom_call.1} parent=1 // pred_check_branch
      %22 = sbr.rel (0) target = $region13
    $region12: #{tpu_custom_call.1} parent=1 // pred_region
      %23 = dma.done [#allocation3], 256
    $region13: #{tpu_custom_call.1} parent=1 // pred_fallthru
      _
    %v24 = vld [vmem:[%s1] sm:$0xff]
    %v25 = vld [vmem:[#allocation2] sm:$0xff]
    %v26 = vld [vmem:[#allocation2 + $0x8] sm:$0xff]
    %28 = vset.pattern.permute.xlu0 0
    %29 = vperm.xlu0 %28, %v24
    %v30 = vpop.permute.xlu0 %29
    %v32 = vmul.f32 %v25, %v30
    %v33 = vmul.f32 %v26, %v30
    %34 = vset.pattern.permute.xlu0 1
    %35 = vperm.xlu0 %34, %v24
    %v36 = vpop.permute.xlu0 %35
    %v38 = vadd.f32 %v32, %v36
    %v39 = vadd.f32 %v33, %v36
    %40 = vst [vmem:[#allocation5] sm:$0xff] %v38
    %41 = vst [vmem:[#allocation5 + $0x8] sm:$0xff] %v39
    // Predicated region
    $region14: #{tpu_custom_call.1} parent=1 // pred_check
      _
    $region15: #{tpu_custom_call.1} parent=1 // pred_check_branch
      %43 = sbr.rel (0) target = $region17
    $region16: #{tpu_custom_call.1} parent=1 // pred_region
      %s45 = ssub.s32 256, 256
      %46 = vsyncadd [#allocation4], %s45
      %s48 = sshll.u32 [#allocation5], 4
      %s49 = int_to_ptr.vmem [resolvable:$true] %s48
      %51 = dma.vmem_to_hbm [thread:$0]  %s49, 256, %s2, [#allocation4]
    $region17: #{tpu_custom_call.1} parent=1 // pred_fallthru
      _
    // Predicated region
    $region18: #{tpu_custom_call.1} parent=1 // pred_check
      _
    $region19: #{tpu_custom_call.1} parent=1 // pred_check_branch
      %53 = sbr.rel (0) target = $region21
    $region20: #{tpu_custom_call.1} parent=1 // pred_region
      %54 = dma.done [#allocation4], 256
    $region21: #{tpu_custom_call.1} parent=1 // pred_fallthru
      _
    %55 = vsyncpa [#allocation3], 1
    %56 = vsyncpa [#allocation4], 1

</llo_original>
